<compile_context>
chip_gen: v7x
topology: tpu7x:2x2x1
jax: 0.10.0
libtpu: 0.0.40
codegen_flags: <defaults>
</compile_context>

<pallas_src>
import jax
import jax.numpy as jnp
import numpy as np
from jax import lax
from jax.experimental import pallas as pl
from jax.experimental.pallas import tpu as pltpu


# ----------------------------- plain-JAX glue helpers ------------------------ #

def _build_taps(x):
    """x: (N, Cin, H, W) -> T: (4*Cin, N*H*W) channel-major tap tensor.

    tap0 = x[ty, tx], tap1 = x[ty, tx+1], tap2 = x[ty+1, tx], tap3 = x[ty+1, tx+1]
    (zero where the shift runs off the input).
    """
    N, Cin, H, W = x.shape
    zc = jnp.zeros((N, Cin, H, 1), x.dtype)
    zr = jnp.zeros((N, Cin, 1, W), x.dtype)
    t0 = x
    t1 = jnp.concatenate([x[:, :, :, 1:], zc], axis=3)
    t2 = jnp.concatenate([x[:, :, 1:, :], zr], axis=2)
    t3 = jnp.concatenate([t2[:, :, :, 1:], zc], axis=3)
    t = jnp.stack([t0, t1, t2, t3], axis=0)                 # (4, N, Cin, H, W)
    return t.transpose(0, 2, 1, 3, 4).reshape(4 * Cin, N * H * W)


def _build_phase_weights(wd):
    """wd: (Cin, Cmid, 3, 3) torch ConvTranspose2d weight -> (4, Cmid, 4*Cin).

    Phase p = (oy%2)*2 + (ox%2); out(oy,ox) = sum over that phase's taps.
    """
    Cin, Cmid = wd.shape[0], wd.shape[1]

    def w(ky, kx):
        return wd[:, :, ky, kx].T                           # (Cmid, Cin)

    z = jnp.zeros((Cmid, Cin), wd.dtype)
    phases = [
        [w(1, 1), z,        z,        z       ],            # (even y, even x)
        [w(1, 2), w(1, 0),  z,        z       ],            # (even y, odd  x)
        [w(2, 1), z,        w(0, 1),  z       ],            # (odd  y, even x)
        [w(2, 2), w(2, 0),  w(0, 2),  w(0, 0) ],            # (odd  y, odd  x)
    ]
    return jnp.stack([jnp.concatenate(p, axis=1) for p in phases], axis=0)


def _vmem_budget_bytes():
    try:
        cap = int(pltpu.get_tpu_info().vmem_capacity_bytes)  # 128 MiB v5e/v6e, 64 MiB v7x
    except Exception:
        cap = 64 * 1024 * 1024
    return max(16 * 1024 * 1024, min(cap // 2, 96 * 1024 * 1024))


def _choose_tiling(mp):
    """Pick a lane-dense M tile (never below 512 unless M itself is smaller)."""
    lane = 128
    mp128 = -(-mp // lane) * lane
    if mp128 <= 4096:                                        # single resident tile
        return mp128, mp128, 1
    tm = 2048                                                # >=512 keeps HBM roofline ~85%+
    mp_pad = -(-mp // tm) * tm
    return tm, mp_pad, mp_pad // tm


# ------------------------------ fused forward pass --------------------------- #

def part_seg_head_forward(x, params, eps=1e-5):
    """x: (N, Cin, H, W) float32 -> (N, num_classes, 2H, 2W) float32."""
    N, Cin, H, W = x.shape
    wd = params["deconv_w"]                                  # (Cin, Cmid, 3, 3)
    gamma, beta = params["bn_w"], params["bn_b"]             # (Cmid,)
    wc, bc = params["conv_w"], params["conv_b"]              # (O, Cmid, 1, 1), (O,)
    Cmid, O = wd.shape[1], wc.shape[0]
    Mp = N * H * W                                           # pixels per sub-pixel phase
    inv_count = 1.0 / float(4 * Mp)                          # BN count = N*(2H)*(2W)

    # glue: phase taps + packed weights (channel-major, M on lanes, bf16 matmul operands)
    taps = _build_taps(x.astype(jnp.bfloat16))               # (4*Cin, Mp)
    wph = _build_phase_weights(wd).astype(jnp.bfloat16)      # (4, Cmid, 4*Cin)
    w1 = wc[:, :, 0, 0].astype(jnp.bfloat16)                 # (O, Cmid)

    tm, mp_pad, gm = _choose_tiling(Mp)
    if mp_pad != Mp:
        # zero columns add 0 to the BN sums; the divisor uses the true pixel count.
        taps = jnp.pad(taps, ((0, 0), (0, mp_pad - Mp)))

    budget = _vmem_budget_bytes()
    vmem_est = (Cmid * 4 * mp_pad * 4                        # resident y scratch (f32)
                + O * 4 * mp_pad * 4 * 2                     # resident output block
                + 4 * Cin * tm * 2 * 2                       # double-buffered bf16 tap tiles
                + (4 * Cmid * 4 * Cin + O * Cmid) * 2 * 2    # weights
                + (2 * Cmid + O) * 4 * 2)                    # gamma/beta/bias
    # TODO(synk): add a two-pass (HBM-resident y) fallback when y overflows the VMEM budget.
    assert 2 * vmem_est <= budget, (
        f"fused PartSegHead needs ~{vmem_est}B of VMEM, budget {budget}B")

    def _kernel(t_ref, wph_ref, g_ref, bta_ref, w1_ref, b_ref, o_ref,
                y_sc, s_sc, q_sc):
        i = pl.program_id(0)

        @pl.when(i == 0)
        def _():
            s_sc[...] = jnp.zeros_like(s_sc)
            q_sc[...] = jnp.zeros_like(q_sc)

        t = t_ref[...]                                       # (4*Cin, tm) bf16
        # 4 sub-pixel phases of the stride-2 transposed conv; y kept phase-blocked along
        # columns (col = phase*mp_pad + pixel) in the resident VMEM scratch.
        for p in range(4):
            yp = jnp.dot(wph_ref[p], t, preferred_element_type=jnp.float32)  # (Cmid, tm)
            col = pl.multiple_of(p * mp_pad + i * tm, tm)
            y_sc[:, pl.ds(col, tm)] = yp
            s_sc[...] += jnp.sum(yp, axis=1, keepdims=True)
            q_sc[...] += jnp.sum(yp * yp, axis=1, keepdims=True)

        @pl.when(i == pl.num_programs(0) - 1)
        def _():
            mean = s_sc[...] * inv_count                     # (Cmid, 1) f32
            var = q_sc[...] * inv_count - mean * mean        # biased (training-mode) var
            scale = g_ref[...] * lax.rsqrt(var + eps)
            shift = bta_ref[...] - mean * scale
            yn = jnp.maximum(y_sc[...] * scale + shift, 0.0)  # BN + ReLU in f32
            o_ref[...] = jnp.dot(w1_ref[...], yn.astype(jnp.bfloat16),
                                 preferred_element_type=jnp.float32) + b_ref[...]

    out_all = pl.pallas_call(
        _kernel,
        out_shape=jax.ShapeDtypeStruct((O, 4 * mp_pad), jnp.float32),
        grid=(gm,),
        in_specs=[
            pl.BlockSpec((4 * Cin, tm), lambda i: (0, i)),        # pipelined tap tiles
            pl.BlockSpec((4, Cmid, 4 * Cin), lambda i: (0, 0, 0)),
            pl.BlockSpec((Cmid, 1), lambda i: (0, 0)),
            pl.BlockSpec((Cmid, 1), lambda i: (0, 0)),
            pl.BlockSpec((O, Cmid), lambda i: (0, 0)),
            pl.BlockSpec((O, 1), lambda i: (0, 0)),
        ],
        out_specs=pl.BlockSpec((O, 4 * mp_pad), lambda i: (0, 0)),  # lane-dense, resident
        scratch_shapes=[
            pltpu.VMEM((Cmid, 4 * mp_pad), jnp.float32),            # resident deconv output
            pltpu.VMEM((Cmid, 1), jnp.float32),                     # sum(y) per channel
            pltpu.VMEM((Cmid, 1), jnp.float32),                     # sum(y^2) per channel
        ],
        compiler_params=pltpu.CompilerParams(
            dimension_semantics=("arbitrary",),   # BN stats + resident y couple all M tiles
            vmem_limit_bytes=int(budget),
        ),
    )(taps, wph, gamma.reshape(Cmid, 1), beta.reshape(Cmid, 1),
      w1, bc.reshape(O, 1))

    # glue: drop M padding and de-interleave the 4 sub-pixel phases back to NCHW.
    out = out_all.reshape(O, 2, 2, mp_pad)[:, :, :, :Mp]
    out = out.reshape(O, 2, 2, N, H, W).transpose(3, 0, 4, 1, 5, 2)
    return out.reshape(N, O, 2 * H, 2 * W)


# ------------------------------ params & reference --------------------------- #

def init_params(key, in_c, mid_c, num_classes):
    k1, k2 = jax.random.split(key)
    return {
        "deconv_w": 0.001 * jax.random.normal(k1, (in_c, mid_c, 3, 3), jnp.float32),
        "bn_w": jnp.ones((mid_c,), jnp.float32),
        "bn_b": jnp.zeros((mid_c,), jnp.float32),
        "conv_w": 0.001 * jax.random.normal(k2, (num_classes, mid_c, 1, 1), jnp.float32),
        "conv_b": jnp.zeros((num_classes,), jnp.float32),
    }


def reference(x, params, eps=1e-5):
    wd = params["deconv_w"]
    w_flip = wd[:, :, ::-1, ::-1].transpose(1, 0, 2, 3)          # (Cmid, Cin, 3, 3)
    y = lax.conv_general_dilated(x, w_flip, window_strides=(1, 1),
                                 padding=((1, 2), (1, 2)), lhs_dilation=(2, 2),
                                 dimension_numbers=("NCHW", "OIHW", "NCHW"))
    mean = jnp.mean(y, axis=(0, 2, 3), keepdims=True)
    var = jnp.mean((y - mean) ** 2, axis=(0, 2, 3), keepdims=True)
    yn = (y - mean) / jnp.sqrt(var + eps)
    yn = yn * params["bn_w"][None, :, None, None] + params["bn_b"][None, :, None, None]
    yr = jnp.maximum(yn, 0.0)
    out = lax.conv_general_dilated(yr, params["conv_w"], (1, 1), "VALID",
                                   dimension_numbers=("NCHW", "OIHW", "NCHW"))
    return out + params["conv_b"][None, :, None, None]


# ----------------------------------- main ------------------------------------ #

if __name__ == "__main__":
    cfg = {"in_c": 4, "mid_c": 8, "num_classes": 6}
    N, H, W = 2, 16, 16

    key = jax.random.PRNGKey(0)
    kx, kp = jax.random.split(key)
    x = jax.random.normal(kx, (N, cfg["in_c"], H, W), jnp.float32)
    params = init_params(kp, cfg["in_c"], cfg["mid_c"], cfg["num_classes"])

    fwd = jax.jit(part_seg_head_forward)
    out = jax.block_until_ready(fwd(x, params))
    assert out.shape == (N, cfg["num_classes"], 2 * H, 2 * W)

    ref = jax.block_until_ready(reference(x, params))
    np.testing.assert_allclose(np.asarray(out), np.asarray(ref),
                               rtol=2e-2, atol=2e-4)
    print("KERNEL_OK")
</pallas_src>

<mosaic_0001>
module attributes {stable_mosaic.version = 11 : i64} {
  func.func @_kernel(%arg0: i32, %arg1: memref<16x512xbf16, #tpu.memory_space<vmem>>, %arg2: memref<4x8x16xbf16, #tpu.memory_space<vmem>>, %arg3: memref<8x1xf32, #tpu.memory_space<vmem>>, %arg4: memref<8x1xf32, #tpu.memory_space<vmem>>, %arg5: memref<6x8xbf16, #tpu.memory_space<vmem>>, %arg6: memref<6x1xf32, #tpu.memory_space<vmem>>, %arg7: memref<6x2048xf32, #tpu.memory_space<vmem>>, %arg8: memref<8x2048xf32, #tpu.memory_space<vmem>>, %arg9: memref<8x1xf32, #tpu.memory_space<vmem>>, %arg10: memref<8x1xf32, #tpu.memory_space<vmem>>) attributes {dimension_semantics = [#tpu.dimension_semantics<arbitrary>], iteration_bounds = array<i64: 1>, scalar_prefetch = 0 : i64, scratch_operands = 3 : i64, tpu.core_type = #tpu.core_type<tc>, window_params = [{transform_indices = @transform_0, window_bounds = array<i64: 16, 512>}, {pipeline_mode = #tpu.pipeline_mode<synchronous>, transform_indices = @transform_1, window_bounds = array<i64: 4, 8, 16>}, {pipeline_mode = #tpu.pipeline_mode<synchronous>, transform_indices = @transform_2, window_bounds = array<i64: 8, 1>}, {pipeline_mode = #tpu.pipeline_mode<synchronous>, transform_indices = @transform_3, window_bounds = array<i64: 8, 1>}, {pipeline_mode = #tpu.pipeline_mode<synchronous>, transform_indices = @transform_4, window_bounds = array<i64: 6, 8>}, {pipeline_mode = #tpu.pipeline_mode<synchronous>, transform_indices = @transform_5, window_bounds = array<i64: 6, 1>}, {pipeline_mode = #tpu.pipeline_mode<synchronous>, transform_indices = @transform_6, window_bounds = array<i64: 6, 2048>}]} {
    %c0_i32 = arith.constant 0 : i32
    %0 = arith.cmpi eq, %arg0, %c0_i32 : i32
    %1 = arith.extui %0 : i1 to i32
    %c0_i32_0 = arith.constant 0 : i32
    %2 = arith.cmpi ne, %1, %c0_i32_0 : i32
    scf.if %2 {
      %cst_65 = arith.constant 0.000000e+00 : f32
      %83 = vector.broadcast %cst_65 : f32 to vector<8x1xf32>
      %c0_66 = arith.constant 0 : index
      %c0_67 = arith.constant 0 : index
      %84 = vector.load %arg9[%c0_66, %c0_67] : memref<8x1xf32, #tpu.memory_space<vmem>>, vector<8x1xf32>
      tpu.vector_store %arg9[%c0_66, %c0_67], %83 {strides = array<i32>} : memref<8x1xf32, #tpu.memory_space<vmem>>, vector<8x1xf32>,
      %cst_68 = arith.constant 0.000000e+00 : f32
      %85 = vector.broadcast %cst_68 : f32 to vector<8x1xf32>
      %c0_69 = arith.constant 0 : index
      %c0_70 = arith.constant 0 : index
      %86 = vector.load %arg10[%c0_69, %c0_70] : memref<8x1xf32, #tpu.memory_space<vmem>>, vector<8x1xf32>
      tpu.vector_store %arg10[%c0_69, %c0_70], %85 {strides = array<i32>} : memref<8x1xf32, #tpu.memory_space<vmem>>, vector<8x1xf32>,
    } else {
    }
    %c0 = arith.constant 0 : index
    %c0_1 = arith.constant 0 : index
    %3 = vector.load %arg1[%c0, %c0_1] : memref<16x512xbf16, #tpu.memory_space<vmem>>, vector<16x512xbf16>
    %c0_2 = arith.constant 0 : index
    %c0_3 = arith.constant 0 : index
    %c0_4 = arith.constant 0 : index
    %4 = vector.load %arg2[%c0_2, %c0_3, %c0_4] : memref<4x8x16xbf16, #tpu.memory_space<vmem>>, vector<1x8x16xbf16>
    %5 = vector.shape_cast %4 : vector<1x8x16xbf16> to vector<8x16xbf16>
    %cst = arith.constant dense<0.000000e+00> : vector<8x512xf32>
    %6 = tpu.matmul %5, %3, %cst {dimension_numbers = #tpu.dot_dimension_numbers<[1], [0], [0], [1], [0, 0, 1, 1], [], []>} : vector<8x16xbf16>, vector<16x512xbf16>, vector<8x512xf32> -> vector<8x512xf32>
    %c512_i32 = arith.constant 512 : i32
    %7 = arith.muli %arg0, %c512_i32 : i32
    %c0_i32_5 = arith.constant 0 : i32
    %8 = arith.addi %c0_i32_5, %7 : i32
    %9 = tpu.assume_multiple %8, 512 : i32
    %c0_6 = arith.constant 0 : index
    %10 = arith.index_cast %9 : i32 to index
    %11 = vector.load %arg8[%c0_6, %10] : memref<8x2048xf32, #tpu.memory_space<vmem>>, vector<8x512xf32>
    tpu.vector_store %arg8[%c0_6, %10], %6 {strides = array<i32>} : memref<8x2048xf32, #tpu.memory_space<vmem>>, vector<8x512xf32>,
    %c0_7 = arith.constant 0 : index
    %c0_8 = arith.constant 0 : index
    %12 = vector.load %arg9[%c0_7, %c0_8] : memref<8x1xf32, #tpu.memory_space<vmem>>, vector<8x1xf32>
    %cst_9 = arith.constant dense<0.000000e+00> : vector<8xf32>
    %13 = vector.multi_reduction <add>, %6, %cst_9 [1] : vector<8x512xf32> to vector<8xf32>
    %14 = vector.shape_cast %13 : vector<8xf32> to vector<8x1xf32>
    %15 = arith.addf %12, %14 : vector<8x1xf32>
    %c0_10 = arith.constant 0 : index
    %c0_11 = arith.constant 0 : index
    %16 = vector.load %arg9[%c0_10, %c0_11] : memref<8x1xf32, #tpu.memory_space<vmem>>, vector<8x1xf32>
    tpu.vector_store %arg9[%c0_10, %c0_11], %15 {strides = array<i32>} : memref<8x1xf32, #tpu.memory_space<vmem>>, vector<8x1xf32>,
    %c0_12 = arith.constant 0 : index
    %c0_13 = arith.constant 0 : index
    %17 = vector.load %arg10[%c0_12, %c0_13] : memref<8x1xf32, #tpu.memory_space<vmem>>, vector<8x1xf32>
    %18 = arith.mulf %6, %6 : vector<8x512xf32>
    %cst_14 = arith.constant dense<0.000000e+00> : vector<8xf32>
    %19 = vector.multi_reduction <add>, %18, %cst_14 [1] : vector<8x512xf32> to vector<8xf32>
    %20 = vector.shape_cast %19 : vector<8xf32> to vector<8x1xf32>
    %21 = arith.addf %17, %20 : vector<8x1xf32>
    %c0_15 = arith.constant 0 : index
    %c0_16 = arith.constant 0 : index
    %22 = vector.load %arg10[%c0_15, %c0_16] : memref<8x1xf32, #tpu.memory_space<vmem>>, vector<8x1xf32>
    tpu.vector_store %arg10[%c0_15, %c0_16], %21 {strides = array<i32>} : memref<8x1xf32, #tpu.memory_space<vmem>>, vector<8x1xf32>,
    %c1 = arith.constant 1 : index
    %c0_17 = arith.constant 0 : index
    %c0_18 = arith.constant 0 : index
    %23 = vector.load %arg2[%c1, %c0_17, %c0_18] : memref<4x8x16xbf16, #tpu.memory_space<vmem>>, vector<1x8x16xbf16>
    %24 = vector.shape_cast %23 : vector<1x8x16xbf16> to vector<8x16xbf16>
    %cst_19 = arith.constant dense<0.000000e+00> : vector<8x512xf32>
    %25 = tpu.matmul %24, %3, %cst_19 {dimension_numbers = #tpu.dot_dimension_numbers<[1], [0], [0], [1], [0, 0, 1, 1], [], []>} : vector<8x16xbf16>, vector<16x512xbf16>, vector<8x512xf32> -> vector<8x512xf32>
    %c512_i32_20 = arith.constant 512 : i32
    %26 = arith.muli %arg0, %c512_i32_20 : i32
    %c512_i32_21 = arith.constant 512 : i32
    %27 = arith.addi %c512_i32_21, %26 : i32
    %28 = tpu.assume_multiple %27, 512 : i32
    %c0_22 = arith.constant 0 : index
    %29 = arith.index_cast %28 : i32 to index
    %30 = vector.load %arg8[%c0_22, %29] : memref<8x2048xf32, #tpu.memory_space<vmem>>, vector<8x512xf32>
    tpu.vector_store %arg8[%c0_22, %29], %25 {strides = array<i32>} : memref<8x2048xf32, #tpu.memory_space<vmem>>, vector<8x512xf32>,
    %c0_23 = arith.constant 0 : index
    %c0_24 = arith.constant 0 : index
    %31 = vector.load %arg9[%c0_23, %c0_24] : memref<8x1xf32, #tpu.memory_space<vmem>>, vector<8x1xf32>
    %cst_25 = arith.constant dense<0.000000e+00> : vector<8xf32>
    %32 = vector.multi_reduction <add>, %25, %cst_25 [1] : vector<8x512xf32> to vector<8xf32>
    %33 = vector.shape_cast %32 : vector<8xf32> to vector<8x1xf32>
    %34 = arith.addf %31, %33 : vector<8x1xf32>
    %c0_26 = arith.constant 0 : index
    %c0_27 = arith.constant 0 : index
    %35 = vector.load %arg9[%c0_26, %c0_27] : memref<8x1xf32, #tpu.memory_space<vmem>>, vector<8x1xf32>
    tpu.vector_store %arg9[%c0_26, %c0_27], %34 {strides = array<i32>} : memref<8x1xf32, #tpu.memory_space<vmem>>, vector<8x1xf32>,
    %c0_28 = arith.constant 0 : index
    %c0_29 = arith.constant 0 : index
    %36 = vector.load %arg10[%c0_28, %c0_29] : memref<8x1xf32, #tpu.memory_space<vmem>>, vector<8x1xf32>
    %37 = arith.mulf %25, %25 : vector<8x512xf32>
    %cst_30 = arith.constant dense<0.000000e+00> : vector<8xf32>
    %38 = vector.multi_reduction <add>, %37, %cst_30 [1] : vector<8x512xf32> to vector<8xf32>
    %39 = vector.shape_cast %38 : vector<8xf32> to vector<8x1xf32>
    %40 = arith.addf %36, %39 : vector<8x1xf32>
    %c0_31 = arith.constant 0 : index
    %c0_32 = arith.constant 0 : index
    %41 = vector.load %arg10[%c0_31, %c0_32] : memref<8x1xf32, #tpu.memory_space<vmem>>, vector<8x1xf32>
    tpu.vector_store %arg10[%c0_31, %c0_32], %40 {strides = array<i32>} : memref<8x1xf32, #tpu.memory_space<vmem>>, vector<8x1xf32>,
    %c2 = arith.constant 2 : index
    %c0_33 = arith.constant 0 : index
    %c0_34 = arith.constant 0 : index
    %42 = vector.load %arg2[%c2, %c0_33, %c0_34] : memref<4x8x16xbf16, #tpu.memory_space<vmem>>, vector<1x8x16xbf16>
    %43 = vector.shape_cast %42 : vector<1x8x16xbf16> to vector<8x16xbf16>
    %cst_35 = arith.constant dense<0.000000e+00> : vector<8x512xf32>
    %44 = tpu.matmul %43, %3, %cst_35 {dimension_numbers = #tpu.dot_dimension_numbers<[1], [0], [0], [1], [0, 0, 1, 1], [], []>} : vector<8x16xbf16>, vector<16x512xbf16>, vector<8x512xf32> -> vector<8x512xf32>
    %c512_i32_36 = arith.constant 512 : i32
    %45 = arith.muli %arg0, %c512_i32_36 : i32
    %c1024_i32 = arith.constant 1024 : i32
    %46 = arith.addi %c1024_i32, %45 : i32
    %47 = tpu.assume_multiple %46, 512 : i32
    %c0_37 = arith.constant 0 : index
    %48 = arith.index_cast %47 : i32 to index
    %49 = vector.load %arg8[%c0_37, %48] : memref<8x2048xf32, #tpu.memory_space<vmem>>, vector<8x512xf32>
    tpu.vector_store %arg8[%c0_37, %48], %44 {strides = array<i32>} : memref<8x2048xf32, #tpu.memory_space<vmem>>, vector<8x512xf32>,
    %c0_38 = arith.constant 0 : index
    %c0_39 = arith.constant 0 : index
    %50 = vector.load %arg9[%c0_38, %c0_39] : memref<8x1xf32, #tpu.memory_space<vmem>>, vector<8x1xf32>
    %cst_40 = arith.constant dense<0.000000e+00> : vector<8xf32>
    %51 = vector.multi_reduction <add>, %44, %cst_40 [1] : vector<8x512xf32> to vector<8xf32>
    %52 = vector.shape_cast %51 : vector<8xf32> to vector<8x1xf32>
    %53 = arith.addf %50, %52 : vector<8x1xf32>
    %c0_41 = arith.constant 0 : index
    %c0_42 = arith.constant 0 : index
    %54 = vector.load %arg9[%c0_41, %c0_42] : memref<8x1xf32, #tpu.memory_space<vmem>>, vector<8x1xf32>
    tpu.vector_store %arg9[%c0_41, %c0_42], %53 {strides = array<i32>} : memref<8x1xf32, #tpu.memory_space<vmem>>, vector<8x1xf32>,
    %c0_43 = arith.constant 0 : index
    %c0_44 = arith.constant 0 : index
    %55 = vector.load %arg10[%c0_43, %c0_44] : memref<8x1xf32, #tpu.memory_space<vmem>>, vector<8x1xf32>
    %56 = arith.mulf %44, %44 : vector<8x512xf32>
    %cst_45 = arith.constant dense<0.000000e+00> : vector<8xf32>
    %57 = vector.multi_reduction <add>, %56, %cst_45 [1] : vector<8x512xf32> to vector<8xf32>
    %58 = vector.shape_cast %57 : vector<8xf32> to vector<8x1xf32>
    %59 = arith.addf %55, %58 : vector<8x1xf32>
    %c0_46 = arith.constant 0 : index
    %c0_47 = arith.constant 0 : index
    %60 = vector.load %arg10[%c0_46, %c0_47] : memref<8x1xf32, #tpu.memory_space<vmem>>, vector<8x1xf32>
    tpu.vector_store %arg10[%c0_46, %c0_47], %59 {strides = array<i32>} : memref<8x1xf32, #tpu.memory_space<vmem>>, vector<8x1xf32>,
    %c3 = arith.constant 3 : index
    %c0_48 = arith.constant 0 : index
    %c0_49 = arith.constant 0 : index
    %61 = vector.load %arg2[%c3, %c0_48, %c0_49] : memref<4x8x16xbf16, #tpu.memory_space<vmem>>, vector<1x8x16xbf16>
    %62 = vector.shape_cast %61 : vector<1x8x16xbf16> to vector<8x16xbf16>
    %cst_50 = arith.constant dense<0.000000e+00> : vector<8x512xf32>
    %63 = tpu.matmul %62, %3, %cst_50 {dimension_numbers = #tpu.dot_dimension_numbers<[1], [0], [0], [1], [0, 0, 1, 1], [], []>} : vector<8x16xbf16>, vector<16x512xbf16>, vector<8x512xf32> -> vector<8x512xf32>
    %c512_i32_51 = arith.constant 512 : i32
    %64 = arith.muli %arg0, %c512_i32_51 : i32
    %c1536_i32 = arith.constant 1536 : i32
    %65 = arith.addi %c1536_i32, %64 : i32
    %66 = tpu.assume_multiple %65, 512 : i32
    %c0_52 = arith.constant 0 : index
    %67 = arith.index_cast %66 : i32 to index
    %68 = vector.load %arg8[%c0_52, %67] : memref<8x2048xf32, #tpu.memory_space<vmem>>, vector<8x512xf32>
    tpu.vector_store %arg8[%c0_52, %67], %63 {strides = array<i32>} : memref<8x2048xf32, #tpu.memory_space<vmem>>, vector<8x512xf32>,
    %c0_53 = arith.constant 0 : index
    %c0_54 = arith.constant 0 : index
    %69 = vector.load %arg9[%c0_53, %c0_54] : memref<8x1xf32, #tpu.memory_space<vmem>>, vector<8x1xf32>
    %cst_55 = arith.constant dense<0.000000e+00> : vector<8xf32>
    %70 = vector.multi_reduction <add>, %63, %cst_55 [1] : vector<8x512xf32> to vector<8xf32>
    %71 = vector.shape_cast %70 : vector<8xf32> to vector<8x1xf32>
    %72 = arith.addf %69, %71 : vector<8x1xf32>
    %c0_56 = arith.constant 0 : index
    %c0_57 = arith.constant 0 : index
    %73 = vector.load %arg9[%c0_56, %c0_57] : memref<8x1xf32, #tpu.memory_space<vmem>>, vector<8x1xf32>
    tpu.vector_store %arg9[%c0_56, %c0_57], %72 {strides = array<i32>} : memref<8x1xf32, #tpu.memory_space<vmem>>, vector<8x1xf32>,
    %c0_58 = arith.constant 0 : index
    %c0_59 = arith.constant 0 : index
    %74 = vector.load %arg10[%c0_58, %c0_59] : memref<8x1xf32, #tpu.memory_space<vmem>>, vector<8x1xf32>
    %75 = arith.mulf %63, %63 : vector<8x512xf32>
    %cst_60 = arith.constant dense<0.000000e+00> : vector<8xf32>
    %76 = vector.multi_reduction <add>, %75, %cst_60 [1] : vector<8x512xf32> to vector<8xf32>
    %77 = vector.shape_cast %76 : vector<8xf32> to vector<8x1xf32>
    %78 = arith.addf %74, %77 : vector<8x1xf32>
    %c0_61 = arith.constant 0 : index
    %c0_62 = arith.constant 0 : index
    %79 = vector.load %arg10[%c0_61, %c0_62] : memref<8x1xf32, #tpu.memory_space<vmem>>, vector<8x1xf32>
    tpu.vector_store %arg10[%c0_61, %c0_62], %78 {strides = array<i32>} : memref<8x1xf32, #tpu.memory_space<vmem>>, vector<8x1xf32>,
    %c0_i32_63 = arith.constant 0 : i32
    %80 = arith.cmpi eq, %arg0, %c0_i32_63 : i32
    %81 = arith.extui %80 : i1 to i32
    %c0_i32_64 = arith.constant 0 : i32
    %82 = arith.cmpi ne, %81, %c0_i32_64 : i32
    scf.if %82 {
      %c0_65 = arith.constant 0 : index
      %c0_66 = arith.constant 0 : index
      %83 = vector.load %arg9[%c0_65, %c0_66] : memref<8x1xf32, #tpu.memory_space<vmem>>, vector<8x1xf32>
      %cst_67 = arith.constant 4.8828125E-4 : f32
      %84 = vector.broadcast %cst_67 : f32 to vector<8x1xf32>
      %85 = arith.mulf %83, %84 : vector<8x1xf32>
      %c0_68 = arith.constant 0 : index
      %c0_69 = arith.constant 0 : index
      %86 = vector.load %arg10[%c0_68, %c0_69] : memref<8x1xf32, #tpu.memory_space<vmem>>, vector<8x1xf32>
      %cst_70 = arith.constant 4.8828125E-4 : f32
      %87 = vector.broadcast %cst_70 : f32 to vector<8x1xf32>
      %88 = arith.mulf %86, %87 : vector<8x1xf32>
      %89 = arith.mulf %85, %85 : vector<8x1xf32>
      %90 = arith.subf %88, %89 : vector<8x1xf32>
      %c0_71 = arith.constant 0 : index
      %c0_72 = arith.constant 0 : index
      %91 = vector.load %arg3[%c0_71, %c0_72] : memref<8x1xf32, #tpu.memory_space<vmem>>, vector<8x1xf32>
      %cst_73 = arith.constant 9.99999974E-6 : f32
      %92 = vector.broadcast %cst_73 : f32 to vector<8x1xf32>
      %93 = arith.addf %90, %92 : vector<8x1xf32>
      %94 = math.rsqrt %93 : vector<8x1xf32>
      %95 = arith.mulf %91, %94 : vector<8x1xf32>
      %c0_74 = arith.constant 0 : index
      %c0_75 = arith.constant 0 : index
      %96 = vector.load %arg4[%c0_74, %c0_75] : memref<8x1xf32, #tpu.memory_space<vmem>>, vector<8x1xf32>
      %97 = arith.mulf %85, %95 : vector<8x1xf32>
      %98 = arith.subf %96, %97 : vector<8x1xf32>
      %c0_76 = arith.constant 0 : index
      %c0_77 = arith.constant 0 : index
      %99 = vector.load %arg8[%c0_76, %c0_77] : memref<8x2048xf32, #tpu.memory_space<vmem>>, vector<8x2048xf32>
      %100 = vector.broadcast %95 : vector<8x1xf32> to vector<8x2048xf32>
      %101 = arith.mulf %99, %100 : vector<8x2048xf32>
      %102 = vector.broadcast %98 : vector<8x1xf32> to vector<8x2048xf32>
      %103 = arith.addf %101, %102 : vector<8x2048xf32>
      %cst_78 = arith.constant 0.000000e+00 : f32
      %104 = vector.broadcast %cst_78 : f32 to vector<8x2048xf32>
      %105 = arith.maximumf %103, %104 : vector<8x2048xf32>
      %c0_79 = arith.constant 0 : index
      %c0_80 = arith.constant 0 : index
      %106 = vector.load %arg5[%c0_79, %c0_80] : memref<6x8xbf16, #tpu.memory_space<vmem>>, vector<6x8xbf16>
      %107 = arith.truncf %105 : vector<8x2048xf32> to vector<8x2048xbf16>
      %cst_81 = arith.constant dense<0.000000e+00> : vector<6x2048xf32>
      %108 = tpu.matmul %106, %107, %cst_81 {dimension_numbers = #tpu.dot_dimension_numbers<[1], [0], [0], [1], [0, 0, 1, 1], [], []>} : vector<6x8xbf16>, vector<8x2048xbf16>, vector<6x2048xf32> -> vector<6x2048xf32>
      %c0_82 = arith.constant 0 : index
      %c0_83 = arith.constant 0 : index
      %109 = vector.load %arg6[%c0_82, %c0_83] : memref<6x1xf32, #tpu.memory_space<vmem>>, vector<6x1xf32>
      %110 = vector.broadcast %109 : vector<6x1xf32> to vector<6x2048xf32>
      %111 = arith.addf %108, %110 : vector<6x2048xf32>
      %c0_84 = arith.constant 0 : index
      %c0_85 = arith.constant 0 : index
      %112 = vector.load %arg7[%c0_84, %c0_85] : memref<6x2048xf32, #tpu.memory_space<vmem>>, vector<6x2048xf32>
      tpu.vector_store %arg7[%c0_84, %c0_85], %111 {strides = array<i32>} : memref<6x2048xf32, #tpu.memory_space<vmem>>, vector<6x2048xf32>,
    } else {
    }
    return
  }
  func.func @transform_0(%arg0: i32) -> (i32, i32) {
    %c0_i32 = arith.constant 0 : i32
    %c0_i32_0 = arith.constant 0 : i32
    return %c0_i32, %arg0 : i32, i32
  }
  func.func @transform_1(%arg0: i32) -> (i32, i32, i32) {
    %c0_i32 = arith.constant 0 : i32
    %c0_i32_0 = arith.constant 0 : i32
    %c0_i32_1 = arith.constant 0 : i32
    %c0_i32_2 = arith.constant 0 : i32
    return %c0_i32, %c0_i32_0, %c0_i32_1 : i32, i32, i32
  }
  func.func @transform_2(%arg0: i32) -> (i32, i32) {
    %c0_i32 = arith.constant 0 : i32
    %c0_i32_0 = arith.constant 0 : i32
    %c0_i32_1 = arith.constant 0 : i32
    return %c0_i32, %c0_i32_0 : i32, i32
  }
  func.func @transform_3(%arg0: i32) -> (i32, i32) {
    %c0_i32 = arith.constant 0 : i32
    %c0_i32_0 = arith.constant 0 : i32
    %c0_i32_1 = arith.constant 0 : i32
    return %c0_i32, %c0_i32_0 : i32, i32
  }
  func.func @transform_4(%arg0: i32) -> (i32, i32) {
    %c0_i32 = arith.constant 0 : i32
    %c0_i32_0 = arith.constant 0 : i32
    %c0_i32_1 = arith.constant 0 : i32
    return %c0_i32, %c0_i32_0 : i32, i32
  }
  func.func @transform_5(%arg0: i32) -> (i32, i32) {
    %c0_i32 = arith.constant 0 : i32
    %c0_i32_0 = arith.constant 0 : i32
    %c0_i32_1 = arith.constant 0 : i32
    return %c0_i32, %c0_i32_0 : i32, i32
  }
  func.func @transform_6(%arg0: i32) -> (i32, i32) {
    %c0_i32 = arith.constant 0 : i32
    %c0_i32_0 = arith.constant 0 : i32
    %c0_i32_1 = arith.constant 0 : i32
    return %c0_i32, %c0_i32_0 : i32, i32
  }
}

</mosaic_0001>

<llo_original>
// kernel: part_seg_head_forward.1
$region0: #{part_seg_head_forward.1}
  #allocation0 [shape = 'u32[]', space=smem, size = 0x4, offset = 0x4, fixed_abs, tag = 'smem constant byte address 0x4 - core index']
  #allocation1 [shape = 'u32[144,128]{1,0:T(1,128)}', space=vmem, size = 0x12000, scoped, tag = 'internal scratch']
  #allocation2 [shape = 'f32[8,2048]{1,0:T(8,128)}', space=vmem, size = 0x10000, scoped, tag = 'scratch operand']
  #allocation3 [shape = 'f32[8,1]{1,0:T(8,128)}', space=vmem, size = 0x1000, scoped, tag = 'scratch operand']
  #allocation4 [shape = 'f32[8,1]{1,0:T(8,128)}', space=vmem, size = 0x1000, scoped, tag = 'scratch operand']
  %s0 = inlined_call_operand.vmem [shape: bf16[16,512], index: 0, kind: input, shape index: {}]
  %s1 = inlined_call_operand.vmem [shape: bf16[4,8,16], index: 1, kind: input, shape index: {}]
  %s2 = inlined_call_operand.vmem [shape: f32[8,1], index: 2, kind: input, shape index: {}]
  %s3 = inlined_call_operand.vmem [shape: f32[8,1], index: 3, kind: input, shape index: {}]
  %s4 = inlined_call_operand.vmem [shape: bf16[6,8], index: 4, kind: input, shape index: {}]
  %s5 = inlined_call_operand.vmem [shape: f32[6,1], index: 5, kind: input, shape index: {}]
  %s6 = inlined_call_operand.vmem [shape: f32[6,2048], index: 6, kind: output, shape index: {}]
  %s7 = sld [smem:[#allocation0]]
  $region42: #{part_seg_head_forward.1} parent=0
    _
  %s9 = ssub.s32 1, %s7
  %s10 = scalar_select 0, %s9, %s7
  // Predicated region
  $region2: #{part_seg_head_forward.1} parent=0 // pred_check
    _
  $region3: #{part_seg_head_forward.1} parent=0 // pred_check_branch
    %12 = sbr.rel (0) target = $region5
  $region4: #{part_seg_head_forward.1} parent=0 // pred_region
    _
  $region5: #{part_seg_head_forward.1} parent=0 // pred_fallthru
    _
  // Predicated region
  $region6: #{part_seg_head_forward.1} parent=0 // pred_check
    _
  $region7: #{part_seg_head_forward.1} parent=0 // pred_check_branch
    %14 = sbr.rel (0) target = $region9
  $region8: #{part_seg_head_forward.1} parent=0 // pred_region
    _
  $region9: #{part_seg_head_forward.1} parent=0 // pred_fallthru
    _
  // Predicated region
  $region10: #{part_seg_head_forward.1} parent=0 // pred_check
    _
  $region11: #{part_seg_head_forward.1} parent=0 // pred_check_branch
    %16 = sbr.rel (0) target = $region13
  $region12: #{part_seg_head_forward.1} parent=0 // pred_region
    _
  $region13: #{part_seg_head_forward.1} parent=0 // pred_fallthru
    _
  // Predicated region
  $region14: #{part_seg_head_forward.1} parent=0 // pred_check
    _
  $region15: #{part_seg_head_forward.1} parent=0 // pred_check_branch
    %18 = sbr.rel (0) target = $region17
  $region16: #{part_seg_head_forward.1} parent=0 // pred_region
    _
  $region17: #{part_seg_head_forward.1} parent=0 // pred_fallthru
    _
  // Predicated region
  $region18: #{part_seg_head_forward.1} parent=0 // pred_check
    _
  $region19: #{part_seg_head_forward.1} parent=0 // pred_check_branch
    %20 = sbr.rel (0) target = $region21
  $region20: #{part_seg_head_forward.1} parent=0 // pred_region
    _
  $region21: #{part_seg_head_forward.1} parent=0 // pred_fallthru
    _
  // Predicated region
  $region22: #{part_seg_head_forward.1} parent=0 // pred_check
    _
  $region23: #{part_seg_head_forward.1} parent=0 // pred_check_branch
    %22 = sbr.rel (0) target = $region25
  $region24: #{part_seg_head_forward.1} parent=0 // pred_region
    _
  $region25: #{part_seg_head_forward.1} parent=0 // pred_fallthru
    _
  %p24 = scmp.eq.s32.totalorder 0, 0
  // Predicated region
  $region26: #{part_seg_head_forward.1} parent=0 // pred_check
    %p25 = pneg %p24
  $region27: #{part_seg_head_forward.1} parent=0 // pred_check_branch
    %27 = sbr.rel (%p25) target = $region29
  $region28: #{part_seg_head_forward.1} parent=0 // pred_region
    %vm28 = vcmask 7168
    %29 = vst.msk [vmem:[#allocation3] sm:$0xff] %vm28, 0.0
    %30 = vst.msk [vmem:[#allocation4] sm:$0xff] %vm28, 0.0
  $region29: #{part_seg_head_forward.1} parent=0 // pred_fallthru
    _
  %v31 = vld [vmem:[%s0] sm:$0xff]
  %v32 = vld [vmem:[%s0 + $0x8] sm:$0xff]
  %v33 = vld [vmem:[%s0 + $0x10] sm:$0xff]
  %v34 = vld [vmem:[%s0 + $0x18] sm:$0xff]
  %v35 = vld [vmem:[%s1] sm:$0xf]
  %v40 = vunpack.c.l.b16 %v31
  %v41 = vunpack.c.h.b16 %v31
  %v42 = vunpack.c.l.b16 %v32
  %v43 = vunpack.c.h.b16 %v32
  %v44 = vunpack.c.l.b16 %v33
  %v45 = vunpack.c.h.b16 %v33
  %v46 = vunpack.c.l.b16 %v34
  %v47 = vunpack.c.h.b16 %v34
  %v48 = vpack.c.b16 %v44, %v40
  %v49 = vpack.c.b16 %v45, %v41
  %v50 = vpack.c.b16 %v46, %v42
  %v51 = vpack.c.b16 %v47, %v43
  %vm56 = vcmask 130048
  %v58 = vsel %vm56, %v35, 0
  %60 = vmatprep.subr.bf16.mxu0 %v49
  %61 = vmatpush1.bf16.msra.mxu0 %v48
  %62 = vmatprep.subr.bf16.mxu0 0
  %63 = vmatpush1.bf16.msra.mxu0 0
  %64 = vmatprep.subr.bf16.mxu0 0
  %65 = vmatpush1.bf16.msra.mxu0 0
  %66 = vmatprep.subr.bf16.mxu0 0
  %67 = vmatpush1.bf16.msra.mxu0 0
  %68 = vmatprep.subr.bf16.mxu0 0
  %69 = vmatpush1.bf16.msra.mxu0 0
  %70 = vmatprep.subr.bf16.mxu0 0
  %71 = vmatpush1.bf16.msra.mxu0 0
  %72 = vmatprep.subr.bf16.mxu0 0
  %73 = vmatpush1.bf16.msra.mxu0 0
  %74 = vmatprep.subr.bf16.mxu0 0
  %75 = vmatpush1.bf16.msra.mxu0 0
  %76 = vmatprep.subr.bf16.mxu0 0
  %77 = vmatpush1.bf16.msra.mxu0 0
  %78 = vmatprep.subr.bf16.mxu0 0
  %79 = vmatpush1.bf16.msra.mxu0 0
  %80 = vmatprep.subr.bf16.mxu0 0
  %81 = vmatpush1.bf16.msra.mxu0 0
  %82 = vmatprep.subr.bf16.mxu0 0
  %83 = vmatpush1.bf16.msra.mxu0 0
  %84 = vmatprep.subr.bf16.mxu0 0
  %85 = vmatpush1.bf16.msra.mxu0 0
  %86 = vmatprep.subr.bf16.mxu0 0
  %87 = vmatpush1.bf16.msra.mxu0 0
  %88 = vmatprep.subr.bf16.mxu0 0
  %89 = vmatpush1.bf16.msra.mxu0 0
  %90 = vmatprep.subr.bf16.mxu0 0
  %91 = vmatpush1.bf16.msra.mxu0 0
  %92 = vmatprep.mubr.bf16.mxu0 0
  %93 = vmatmul.mubr.bf16.gmra.mrb[0].mxu0 %v58
  %v94 = vpop.f32.mrb[0].mxu0
  %v95 = vadd.f32 0.0, %v94
  %v96 = vpop.f32.mrb[0].mxu0
  %v97 = vadd.f32 0.0, %v96
  %v98 = vpop.f32.mrb[0].mxu0
  %v99 = vpop.f32.mrb[0].mxu0
  %100 = vdwg.mxu0
  %101 = vmatprep.subr.bf16.mxu0 %v51
  %102 = vmatpush1.bf16.msra.mxu0 %v50
  %103 = vmatprep.subr.bf16.mxu0 0
  %104 = vmatpush1.bf16.msra.mxu0 0
  %105 = vmatprep.subr.bf16.mxu0 0
  %106 = vmatpush1.bf16.msra.mxu0 0
  %107 = vmatprep.subr.bf16.mxu0 0
  %108 = vmatpush1.bf16.msra.mxu0 0
  %109 = vmatprep.subr.bf16.mxu0 0
  %110 = vmatpush1.bf16.msra.mxu0 0
  %111 = vmatprep.subr.bf16.mxu0 0
  %112 = vmatpush1.bf16.msra.mxu0 0
  %113 = vmatprep.subr.bf16.mxu0 0
  %114 = vmatpush1.bf16.msra.mxu0 0
  %115 = vmatprep.subr.bf16.mxu0 0
  %116 = vmatpush1.bf16.msra.mxu0 0
  %117 = vmatprep.subr.bf16.mxu0 0
  %118 = vmatpush1.bf16.msra.mxu0 0
  %119 = vmatprep.subr.bf16.mxu0 0
  %120 = vmatpush1.bf16.msra.mxu0 0
  %121 = vmatprep.subr.bf16.mxu0 0
  %122 = vmatpush1.bf16.msra.mxu0 0
  %123 = vmatprep.subr.bf16.mxu0 0
  %124 = vmatpush1.bf16.msra.mxu0 0
  %125 = vmatprep.subr.bf16.mxu0 0
  %126 = vmatpush1.bf16.msra.mxu0 0
  %127 = vmatprep.subr.bf16.mxu0 0
  %128 = vmatpush1.bf16.msra.mxu0 0
  %129 = vmatprep.subr.bf16.mxu0 0
  %130 = vmatpush1.bf16.msra.mxu0 0
  %131 = vmatprep.subr.bf16.mxu0 0
  %132 = vmatpush1.bf16.msra.mxu0 0
  %133 = vmatprep.mubr.bf16.mxu0 0
  %134 = vmatmul.mubr.bf16.gmra.mrb[0].mxu0 %v58
  %v135 = vpop.f32.mrb[0].mxu0
  %v136 = vadd.f32 0.0, %v135
  %v137 = vpop.f32.mrb[0].mxu0
  %v138 = vadd.f32 0.0, %v137
  %v139 = vpop.f32.mrb[0].mxu0
  %v140 = vpop.f32.mrb[0].mxu0
  %141 = vdwg.mxu0
  %s142 = smul.u32 0, 512
  %s143 = sshra.s32 %s142, 7
  %s144 = sand.u32 %s142, 127
  %s145 = smul.addr %s143, 8
  %s146 = scalar_lea.vmem [#allocation2], %s145
  %147 = vst [vmem:[%s146] sm:$0xff] %v95
  %148 = vst [vmem:[%s146 + $0x8] sm:$0xff] %v97
  %149 = vst [vmem:[%s146 + $0x10] sm:$0xff] %v136
  %150 = vst [vmem:[%s146 + $0x18] sm:$0xff] %v138
  %v151 = vld [vmem:[#allocation3] sm:$0xff]
  %v152 = vadd.f32 %v95, %v97
  %v153 = vadd.f32 %v152, %v136
  %v154 = vadd.f32 %v153, %v138
  %155 = vadd.xlane.f32.xlu0 %v154
  %v156 = vpop.xlane.xlu0 %155
  %v157 = vadd.f32 %v151, %v156
  %vm158 = vcmask 7168
  %159 = vst.msk [vmem:[#allocation3] sm:$0xff] %vm158, %v157
  %v160 = vld [vmem:[#allocation4] sm:$0xff]
  %v161 = vmul.f32 %v95, %v95
  %v162 = vmul.f32 %v97, %v97
  %v163 = vmul.f32 %v136, %v136
  %v164 = vmul.f32 %v138, %v138
  %v165 = vadd.f32 %v161, %v162
  %v166 = vadd.f32 %v165, %v163
  %v167 = vadd.f32 %v166, %v164
  %168 = vadd.xlane.f32.xlu0 %v167
  %v169 = vpop.xlane.xlu0 %168
  %v170 = vadd.f32 %v160, %v169
  %171 = vst.msk [vmem:[#allocation4] sm:$0xff] %vm158, %v170
  %s172 = scalar_lea.vmem %s1, 4
  %v173 = vld [vmem:[%s172] sm:$0xf]
  %v175 = vsel %vm56, %v173, 0
  %177 = vmatprep.subr.bf16.mxu0 %v49
  %178 = vmatpush1.bf16.msra.mxu0 %v48
  %179 = vmatprep.subr.bf16.mxu0 0
  %180 = vmatpush1.bf16.msra.mxu0 0
  %181 = vmatprep.subr.bf16.mxu0 0
  %182 = vmatpush1.bf16.msra.mxu0 0
  %183 = vmatprep.subr.bf16.mxu0 0
  %184 = vmatpush1.bf16.msra.mxu0 0
  %185 = vmatprep.subr.bf16.mxu0 0
  %186 = vmatpush1.bf16.msra.mxu0 0
  %187 = vmatprep.subr.bf16.mxu0 0
  %188 = vmatpush1.bf16.msra.mxu0 0
  %189 = vmatprep.subr.bf16.mxu0 0
  %190 = vmatpush1.bf16.msra.mxu0 0
  %191 = vmatprep.subr.bf16.mxu0 0
  %192 = vmatpush1.bf16.msra.mxu0 0
  %193 = vmatprep.subr.bf16.mxu0 0
  %194 = vmatpush1.bf16.msra.mxu0 0
  %195 = vmatprep.subr.bf16.mxu0 0
  %196 = vmatpush1.bf16.msra.mxu0 0
  %197 = vmatprep.subr.bf16.mxu0 0
  %198 = vmatpush1.bf16.msra.mxu0 0
  %199 = vmatprep.subr.bf16.mxu0 0
  %200 = vmatpush1.bf16.msra.mxu0 0
  %201 = vmatprep.subr.bf16.mxu0 0
  %202 = vmatpush1.bf16.msra.mxu0 0
  %203 = vmatprep.subr.bf16.mxu0 0
  %204 = vmatpush1.bf16.msra.mxu0 0
  %205 = vmatprep.subr.bf16.mxu0 0
  %206 = vmatpush1.bf16.msra.mxu0 0
  %207 = vmatprep.subr.bf16.mxu0 0
  %208 = vmatpush1.bf16.msra.mxu0 0
  %209 = vmatprep.mubr.bf16.mxu0 0
  %210 = vmatmul.mubr.bf16.gmra.mrb[0].mxu0 %v175
  %v211 = vpop.f32.mrb[0].mxu0
  %v212 = vadd.f32 0.0, %v211
  %v213 = vpop.f32.mrb[0].mxu0
  %v214 = vadd.f32 0.0, %v213
  %v215 = vpop.f32.mrb[0].mxu0
  %v216 = vpop.f32.mrb[0].mxu0
  %217 = vdwg.mxu0
  %218 = vmatprep.subr.bf16.mxu0 %v51
  %219 = vmatpush1.bf16.msra.mxu0 %v50
  %220 = vmatprep.subr.bf16.mxu0 0
  %221 = vmatpush1.bf16.msra.mxu0 0
  %222 = vmatprep.subr.bf16.mxu0 0
  %223 = vmatpush1.bf16.msra.mxu0 0
  %224 = vmatprep.subr.bf16.mxu0 0
  %225 = vmatpush1.bf16.msra.mxu0 0
  %226 = vmatprep.subr.bf16.mxu0 0
  %227 = vmatpush1.bf16.msra.mxu0 0
  %228 = vmatprep.subr.bf16.mxu0 0
  %229 = vmatpush1.bf16.msra.mxu0 0
  %230 = vmatprep.subr.bf16.mxu0 0
  %231 = vmatpush1.bf16.msra.mxu0 0
  %232 = vmatprep.subr.bf16.mxu0 0
  %233 = vmatpush1.bf16.msra.mxu0 0
  %234 = vmatprep.subr.bf16.mxu0 0
  %235 = vmatpush1.bf16.msra.mxu0 0
  %236 = vmatprep.subr.bf16.mxu0 0
  %237 = vmatpush1.bf16.msra.mxu0 0
  %238 = vmatprep.subr.bf16.mxu0 0
  %239 = vmatpush1.bf16.msra.mxu0 0
  %240 = vmatprep.subr.bf16.mxu0 0
  %241 = vmatpush1.bf16.msra.mxu0 0
  %242 = vmatprep.subr.bf16.mxu0 0
  %243 = vmatpush1.bf16.msra.mxu0 0
  %244 = vmatprep.subr.bf16.mxu0 0
  %245 = vmatpush1.bf16.msra.mxu0 0
  %246 = vmatprep.subr.bf16.mxu0 0
  %247 = vmatpush1.bf16.msra.mxu0 0
  %248 = vmatprep.subr.bf16.mxu0 0
  %249 = vmatpush1.bf16.msra.mxu0 0
  %250 = vmatprep.mubr.bf16.mxu0 0
  %251 = vmatmul.mubr.bf16.gmra.mrb[0].mxu0 %v175
  %v252 = vpop.f32.mrb[0].mxu0
  %v253 = vadd.f32 0.0, %v252
  %v254 = vpop.f32.mrb[0].mxu0
  %v255 = vadd.f32 0.0, %v254
  %v256 = vpop.f32.mrb[0].mxu0
  %v257 = vpop.f32.mrb[0].mxu0
  %258 = vdwg.mxu0
  %s259 = sadd.s32 %s142, 512
  %s260 = sshra.s32 %s259, 7
  %s261 = sand.u32 %s259, 127
  %s262 = smul.addr %s260, 8
  %s263 = scalar_lea.vmem [#allocation2], %s262
  %264 = vst [vmem:[%s263] sm:$0xff] %v212
  %265 = vst [vmem:[%s263 + $0x8] sm:$0xff] %v214
  %266 = vst [vmem:[%s263 + $0x10] sm:$0xff] %v253
  %267 = vst [vmem:[%s263 + $0x18] sm:$0xff] %v255
  %v268 = vld [vmem:[#allocation3] sm:$0xff]
  %v269 = vadd.f32 %v212, %v214
  %v270 = vadd.f32 %v269, %v253
  %v271 = vadd.f32 %v270, %v255
  %272 = vadd.xlane.f32.xlu0 %v271
  %v273 = vpop.xlane.xlu0 %272
  %v274 = vadd.f32 %v268, %v273
  %275 = vst.msk [vmem:[#allocation3] sm:$0xff] %vm158, %v274
  %v276 = vld [vmem:[#allocation4] sm:$0xff]
  %v277 = vmul.f32 %v212, %v212
  %v278 = vmul.f32 %v214, %v214
  %v279 = vmul.f32 %v253, %v253
  %v280 = vmul.f32 %v255, %v255
  %v281 = vadd.f32 %v277, %v278
  %v282 = vadd.f32 %v281, %v279
  %v283 = vadd.f32 %v282, %v280
  %284 = vadd.xlane.f32.xlu0 %v283
  %v285 = vpop.xlane.xlu0 %284
  %v286 = vadd.f32 %v276, %v285
  %287 = vst.msk [vmem:[#allocation4] sm:$0xff] %vm158, %v286
  %s288 = scalar_lea.vmem %s1, 8
  %v289 = vld [vmem:[%s288] sm:$0xf]
  %v291 = vsel %vm56, %v289, 0
  %293 = vmatprep.subr.bf16.mxu0 %v49
  %294 = vmatpush1.bf16.msra.mxu0 %v48
  %295 = vmatprep.subr.bf16.mxu0 0
  %296 = vmatpush1.bf16.msra.mxu0 0
  %297 = vmatprep.subr.bf16.mxu0 0
  %298 = vmatpush1.bf16.msra.mxu0 0
  %299 = vmatprep.subr.bf16.mxu0 0
  %300 = vmatpush1.bf16.msra.mxu0 0
  %301 = vmatprep.subr.bf16.mxu0 0
  %302 = vmatpush1.bf16.msra.mxu0 0
  %303 = vmatprep.subr.bf16.mxu0 0
  %304 = vmatpush1.bf16.msra.mxu0 0
  %305 = vmatprep.subr.bf16.mxu0 0
  %306 = vmatpush1.bf16.msra.mxu0 0
  %307 = vmatprep.subr.bf16.mxu0 0
  %308 = vmatpush1.bf16.msra.mxu0 0
  %309 = vmatprep.subr.bf16.mxu0 0
  %310 = vmatpush1.bf16.msra.mxu0 0
  %311 = vmatprep.subr.bf16.mxu0 0
  %312 = vmatpush1.bf16.msra.mxu0 0
  %313 = vmatprep.subr.bf16.mxu0 0
  %314 = vmatpush1.bf16.msra.mxu0 0
  %315 = vmatprep.subr.bf16.mxu0 0
  %316 = vmatpush1.bf16.msra.mxu0 0
  %317 = vmatprep.subr.bf16.mxu0 0
  %318 = vmatpush1.bf16.msra.mxu0 0
  %319 = vmatprep.subr.bf16.mxu0 0
  %320 = vmatpush1.bf16.msra.mxu0 0
  %321 = vmatprep.subr.bf16.mxu0 0
  %322 = vmatpush1.bf16.msra.mxu0 0
  %323 = vmatprep.subr.bf16.mxu0 0
  %324 = vmatpush1.bf16.msra.mxu0 0
  %325 = vmatprep.mubr.bf16.mxu0 0
  %326 = vmatmul.mubr.bf16.gmra.mrb[0].mxu0 %v291
  %v327 = vpop.f32.mrb[0].mxu0
  %v328 = vadd.f32 0.0, %v327
  %v329 = vpop.f32.mrb[0].mxu0
  %v330 = vadd.f32 0.0, %v329
  %v331 = vpop.f32.mrb[0].mxu0
  %v332 = vpop.f32.mrb[0].mxu0
  %333 = vdwg.mxu0
  %334 = vmatprep.subr.bf16.mxu0 %v51
  %335 = vmatpush1.bf16.msra.mxu0 %v50
  %336 = vmatprep.subr.bf16.mxu0 0
  %337 = vmatpush1.bf16.msra.mxu0 0
  %338 = vmatprep.subr.bf16.mxu0 0
  %339 = vmatpush1.bf16.msra.mxu0 0
  %340 = vmatprep.subr.bf16.mxu0 0
  %341 = vmatpush1.bf16.msra.mxu0 0
  %342 = vmatprep.subr.bf16.mxu0 0
  %343 = vmatpush1.bf16.msra.mxu0 0
  %344 = vmatprep.subr.bf16.mxu0 0
  %345 = vmatpush1.bf16.msra.mxu0 0
  %346 = vmatprep.subr.bf16.mxu0 0
  %347 = vmatpush1.bf16.msra.mxu0 0
  %348 = vmatprep.subr.bf16.mxu0 0
  %349 = vmatpush1.bf16.msra.mxu0 0
  %350 = vmatprep.subr.bf16.mxu0 0
  %351 = vmatpush1.bf16.msra.mxu0 0
  %352 = vmatprep.subr.bf16.mxu0 0
  %353 = vmatpush1.bf16.msra.mxu0 0
  %354 = vmatprep.subr.bf16.mxu0 0
  %355 = vmatpush1.bf16.msra.mxu0 0
  %356 = vmatprep.subr.bf16.mxu0 0
  %357 = vmatpush1.bf16.msra.mxu0 0
  %358 = vmatprep.subr.bf16.mxu0 0
  %359 = vmatpush1.bf16.msra.mxu0 0
  %360 = vmatprep.subr.bf16.mxu0 0
  %361 = vmatpush1.bf16.msra.mxu0 0
  %362 = vmatprep.subr.bf16.mxu0 0
  %363 = vmatpush1.bf16.msra.mxu0 0
  %364 = vmatprep.subr.bf16.mxu0 0
  %365 = vmatpush1.bf16.msra.mxu0 0
  %366 = vmatprep.mubr.bf16.mxu0 0
  %367 = vmatmul.mubr.bf16.gmra.mrb[0].mxu0 %v291
  %v368 = vpop.f32.mrb[0].mxu0
  %v369 = vadd.f32 0.0, %v368
  %v370 = vpop.f32.mrb[0].mxu0
  %v371 = vadd.f32 0.0, %v370
  %v372 = vpop.f32.mrb[0].mxu0
  %v373 = vpop.f32.mrb[0].mxu0
  %374 = vdwg.mxu0
  %s375 = sadd.s32 %s142, 1024
  %s376 = sshra.s32 %s375, 7
  %s377 = sand.u32 %s375, 127
  %s378 = smul.addr %s376, 8
  %s379 = scalar_lea.vmem [#allocation2], %s378
  %380 = vst [vmem:[%s379] sm:$0xff] %v328
  %381 = vst [vmem:[%s379 + $0x8] sm:$0xff] %v330
  %382 = vst [vmem:[%s379 + $0x10] sm:$0xff] %v369
  %383 = vst [vmem:[%s379 + $0x18] sm:$0xff] %v371
  %v384 = vld [vmem:[#allocation3] sm:$0xff]
  %v385 = vadd.f32 %v328, %v330
  %v386 = vadd.f32 %v385, %v369
  %v387 = vadd.f32 %v386, %v371
  %388 = vadd.xlane.f32.xlu0 %v387
  %v389 = vpop.xlane.xlu0 %388
  %v390 = vadd.f32 %v384, %v389
  %391 = vst.msk [vmem:[#allocation3] sm:$0xff] %vm158, %v390
  %v392 = vld [vmem:[#allocation4] sm:$0xff]
  %v393 = vmul.f32 %v328, %v328
  %v394 = vmul.f32 %v330, %v330
  %v395 = vmul.f32 %v369, %v369
  %v396 = vmul.f32 %v371, %v371
  %v397 = vadd.f32 %v393, %v394
  %v398 = vadd.f32 %v397, %v395
  %v399 = vadd.f32 %v398, %v396
  %400 = vadd.xlane.f32.xlu0 %v399
  %v401 = vpop.xlane.xlu0 %400
  %v402 = vadd.f32 %v392, %v401
  %403 = vst.msk [vmem:[#allocation4] sm:$0xff] %vm158, %v402
  %s404 = scalar_lea.vmem %s1, 12
  %v405 = vld [vmem:[%s404] sm:$0xf]
  %v407 = vsel %vm56, %v405, 0
  %409 = vmatprep.subr.bf16.mxu0 %v49
  %410 = vmatpush1.bf16.msra.mxu0 %v48
  %411 = vmatprep.subr.bf16.mxu0 0
  %412 = vmatpush1.bf16.msra.mxu0 0
  %413 = vmatprep.subr.bf16.mxu0 0
  %414 = vmatpush1.bf16.msra.mxu0 0
  %415 = vmatprep.subr.bf16.mxu0 0
  %416 = vmatpush1.bf16.msra.mxu0 0
  %417 = vmatprep.subr.bf16.mxu0 0
  %418 = vmatpush1.bf16.msra.mxu0 0
  %419 = vmatprep.subr.bf16.mxu0 0
  %420 = vmatpush1.bf16.msra.mxu0 0
  %421 = vmatprep.subr.bf16.mxu0 0
  %422 = vmatpush1.bf16.msra.mxu0 0
  %423 = vmatprep.subr.bf16.mxu0 0
  %424 = vmatpush1.bf16.msra.mxu0 0
  %425 = vmatprep.subr.bf16.mxu0 0
  %426 = vmatpush1.bf16.msra.mxu0 0
  %427 = vmatprep.subr.bf16.mxu0 0
  %428 = vmatpush1.bf16.msra.mxu0 0
  %429 = vmatprep.subr.bf16.mxu0 0
  %430 = vmatpush1.bf16.msra.mxu0 0
  %431 = vmatprep.subr.bf16.mxu0 0
  %432 = vmatpush1.bf16.msra.mxu0 0
  %433 = vmatprep.subr.bf16.mxu0 0
  %434 = vmatpush1.bf16.msra.mxu0 0
  %435 = vmatprep.subr.bf16.mxu0 0
  %436 = vmatpush1.bf16.msra.mxu0 0
  %437 = vmatprep.subr.bf16.mxu0 0
  %438 = vmatpush1.bf16.msra.mxu0 0
  %439 = vmatprep.subr.bf16.mxu0 0
  %440 = vmatpush1.bf16.msra.mxu0 0
  %441 = vmatprep.mubr.bf16.mxu0 0
  %442 = vmatmul.mubr.bf16.gmra.mrb[0].mxu0 %v407
  %v443 = vpop.f32.mrb[0].mxu0
  %v444 = vadd.f32 0.0, %v443
  %v445 = vpop.f32.mrb[0].mxu0
  %v446 = vadd.f32 0.0, %v445
  %v447 = vpop.f32.mrb[0].mxu0
  %v448 = vpop.f32.mrb[0].mxu0
  %449 = vdwg.mxu0
  %450 = vmatprep.subr.bf16.mxu0 %v51
  %451 = vmatpush1.bf16.msra.mxu0 %v50
  %452 = vmatprep.subr.bf16.mxu0 0
  %453 = vmatpush1.bf16.msra.mxu0 0
  %454 = vmatprep.subr.bf16.mxu0 0
  %455 = vmatpush1.bf16.msra.mxu0 0
  %456 = vmatprep.subr.bf16.mxu0 0
  %457 = vmatpush1.bf16.msra.mxu0 0
  %458 = vmatprep.subr.bf16.mxu0 0
  %459 = vmatpush1.bf16.msra.mxu0 0
  %460 = vmatprep.subr.bf16.mxu0 0
  %461 = vmatpush1.bf16.msra.mxu0 0
  %462 = vmatprep.subr.bf16.mxu0 0
  %463 = vmatpush1.bf16.msra.mxu0 0
  %464 = vmatprep.subr.bf16.mxu0 0
  %465 = vmatpush1.bf16.msra.mxu0 0
  %466 = vmatprep.subr.bf16.mxu0 0
  %467 = vmatpush1.bf16.msra.mxu0 0
  %468 = vmatprep.subr.bf16.mxu0 0
  %469 = vmatpush1.bf16.msra.mxu0 0
  %470 = vmatprep.subr.bf16.mxu0 0
  %471 = vmatpush1.bf16.msra.mxu0 0
  %472 = vmatprep.subr.bf16.mxu0 0
  %473 = vmatpush1.bf16.msra.mxu0 0
  %474 = vmatprep.subr.bf16.mxu0 0
  %475 = vmatpush1.bf16.msra.mxu0 0
  %476 = vmatprep.subr.bf16.mxu0 0
  %477 = vmatpush1.bf16.msra.mxu0 0
  %478 = vmatprep.subr.bf16.mxu0 0
  %479 = vmatpush1.bf16.msra.mxu0 0
  %480 = vmatprep.subr.bf16.mxu0 0
  %481 = vmatpush1.bf16.msra.mxu0 0
  %482 = vmatprep.mubr.bf16.mxu0 0
  %483 = vmatmul.mubr.bf16.gmra.mrb[0].mxu0 %v407
  %v484 = vpop.f32.mrb[0].mxu0
  %v485 = vadd.f32 0.0, %v484
  %v486 = vpop.f32.mrb[0].mxu0
  %v487 = vadd.f32 0.0, %v486
  %v488 = vpop.f32.mrb[0].mxu0
  %v489 = vpop.f32.mrb[0].mxu0
  %490 = vdwg.mxu0
  %s491 = sadd.s32 %s142, 1536
  %s492 = sshra.s32 %s491, 7
  %s493 = sand.u32 %s491, 127
  %s494 = smul.addr %s492, 8
  %s495 = scalar_lea.vmem [#allocation2], %s494
  %496 = vst [vmem:[%s495] sm:$0xff] %v444
  %497 = vst [vmem:[%s495 + $0x8] sm:$0xff] %v446
  %498 = vst [vmem:[%s495 + $0x10] sm:$0xff] %v485
  %499 = vst [vmem:[%s495 + $0x18] sm:$0xff] %v487
  %v500 = vld [vmem:[#allocation3] sm:$0xff]
  %v501 = vadd.f32 %v444, %v446
  %v502 = vadd.f32 %v501, %v485
  %v503 = vadd.f32 %v502, %v487
  %504 = vadd.xlane.f32.xlu0 %v503
  %v505 = vpop.xlane.xlu0 %504
  %v506 = vadd.f32 %v500, %v505
  %507 = vst.msk [vmem:[#allocation3] sm:$0xff] %vm158, %v506
  %v508 = vld [vmem:[#allocation4] sm:$0xff]
  %v509 = vmul.f32 %v444, %v444
  %v510 = vmul.f32 %v446, %v446
  %v511 = vmul.f32 %v485, %v485
  %v512 = vmul.f32 %v487, %v487
  %v513 = vadd.f32 %v509, %v510
  %v514 = vadd.f32 %v513, %v511
  %v515 = vadd.f32 %v514, %v512
  %516 = vadd.xlane.f32.xlu0 %v515
  %v517 = vpop.xlane.xlu0 %516
  %v518 = vadd.f32 %v508, %v517
  %519 = vst.msk [vmem:[#allocation4] sm:$0xff] %vm158, %v518
  // Predicated region
  $region30: #{part_seg_head_forward.1} parent=0 // pred_check
    %p520 = pneg %p24
  $region31: #{part_seg_head_forward.1} parent=0 // pred_check_branch
    %522 = sbr.rel (%p520) target = $region33
  $region32: #{part_seg_head_forward.1} parent=0 // pred_region
    %v523 = vld [vmem:[#allocation3] sm:$0xff]
    %v524 = vmul.f32 %v523, 0.00048828125
    %v525 = vld [vmem:[#allocation4] sm:$0xff]
    %v526 = vmul.f32 %v525, 0.00048828125
    %v527 = vmul.f32 %v524, %v524
    %v528 = vsub.f32 %v526, %v527
    %v529 = vld [vmem:[%s2] sm:$0xff]
    %v530 = vadd.f32 %v528, 1e-05
    %v531 = vrsqrt.pop %v530
    %v532 = vmul.f32 %v529, %v531
    %v533 = vld [vmem:[%s3] sm:$0xff]
    %v534 = vmul.f32 %v524, %v532
    %v535 = vsub.f32 %v533, %v534
    %v536 = vld [vmem:[#allocation2] sm:$0xff]
    %v537 = vld [vmem:[#allocation2 + $0x8] sm:$0xff]
    %v538 = vld [vmem:[#allocation2 + $0x10] sm:$0xff]
    %v539 = vld [vmem:[#allocation2 + $0x18] sm:$0xff]
    %v540 = vld [vmem:[#allocation2 + $0x20] sm:$0xff]
    %v541 = vld [vmem:[#allocation2 + $0x28] sm:$0xff]
    %v542 = vld [vmem:[#allocation2 + $0x30] sm:$0xff]
    %v543 = vld [vmem:[#allocation2 + $0x38] sm:$0xff]
    %v544 = vld [vmem:[#allocation2 + $0x40] sm:$0xff]
    %v545 = vld [vmem:[#allocation2 + $0x48] sm:$0xff]
    %v546 = vld [vmem:[#allocation2 + $0x50] sm:$0xff]
    %v547 = vld [vmem:[#allocation2 + $0x58] sm:$0xff]
    %v548 = vld [vmem:[#allocation2 + $0x60] sm:$0xff]
    %v549 = vld [vmem:[#allocation2 + $0x68] sm:$0xff]
    %v550 = vld [vmem:[#allocation2 + $0x70] sm:$0xff]
    %v551 = vld [vmem:[#allocation2 + $0x78] sm:$0xff]
    %553 = vset.pattern.permute.xlu0 0
    %554 = vperm.xlu0 %553, %v532
    %v555 = vpop.permute.xlu0 %554
    %v557 = vmul.f32 %v536, %v555
    %v558 = vmul.f32 %v537, %v555
    %v559 = vmul.f32 %v538, %v555
    %v560 = vmul.f32 %v539, %v555
    %v561 = vmul.f32 %v540, %v555
    %v562 = vmul.f32 %v541, %v555
    %v563 = vmul.f32 %v542, %v555
    %v564 = vmul.f32 %v543, %v555
    %v565 = vmul.f32 %v544, %v555
    %v566 = vmul.f32 %v545, %v555
    %v567 = vmul.f32 %v546, %v555
    %v568 = vmul.f32 %v547, %v555
    %v569 = vmul.f32 %v548, %v555
    %v570 = vmul.f32 %v549, %v555
    %v571 = vmul.f32 %v550, %v555
    %v572 = vmul.f32 %v551, %v555
    %574 = vset.pattern.permute.xlu0 0
    %575 = vperm.xlu0 %574, %v535
    %v576 = vpop.permute.xlu0 %575
    %v578 = vadd.f32 %v557, %v576
    %v579 = vadd.f32 %v558, %v576
    %v580 = vadd.f32 %v559, %v576
    %v581 = vadd.f32 %v560, %v576
    %v582 = vadd.f32 %v561, %v576
    %v583 = vadd.f32 %v562, %v576
    %v584 = vadd.f32 %v563, %v576
    %v585 = vadd.f32 %v564, %v576
    %v586 = vadd.f32 %v565, %v576
    %v587 = vadd.f32 %v566, %v576
    %v588 = vadd.f32 %v567, %v576
    %v589 = vadd.f32 %v568, %v576
    %v590 = vadd.f32 %v569, %v576
    %v591 = vadd.f32 %v570, %v576
    %v592 = vadd.f32 %v571, %v576
    %v593 = vadd.f32 %v572, %v576
    %v594 = vmax.f32 %v578, 0.0
    %v595 = vmax.f32 %v579, 0.0
    %v596 = vmax.f32 %v580, 0.0
    %v597 = vmax.f32 %v581, 0.0
    %v598 = vmax.f32 %v582, 0.0
    %v599 = vmax.f32 %v583, 0.0
    %v600 = vmax.f32 %v584, 0.0
    %v601 = vmax.f32 %v585, 0.0
    %v602 = vmax.f32 %v586, 0.0
    %v603 = vmax.f32 %v587, 0.0
    %v604 = vmax.f32 %v588, 0.0
    %v605 = vmax.f32 %v589, 0.0
    %v606 = vmax.f32 %v590, 0.0
    %v607 = vmax.f32 %v591, 0.0
    %v608 = vmax.f32 %v592, 0.0
    %v609 = vmax.f32 %v593, 0.0
    %v610 = vld [vmem:[%s4] sm:$0x7]
    %v611 = vpack.c.bf16 %v594, %v594
    %v612 = vpack.c.bf16 %v595, %v595
    %v613 = vpack.c.bf16 %v596, %v596
    %v614 = vpack.c.bf16 %v597, %v597
    %v615 = vpack.c.bf16 %v598, %v598
    %v616 = vpack.c.bf16 %v599, %v599
    %v617 = vpack.c.bf16 %v600, %v600
    %v618 = vpack.c.bf16 %v601, %v601
    %v619 = vpack.c.bf16 %v602, %v602
    %v620 = vpack.c.bf16 %v603, %v603
    %v621 = vpack.c.bf16 %v604, %v604
    %v622 = vpack.c.bf16 %v605, %v605
    %v623 = vpack.c.bf16 %v606, %v606
    %v624 = vpack.c.bf16 %v607, %v607
    %v625 = vpack.c.bf16 %v608, %v608
    %v626 = vpack.c.bf16 %v609, %v609
    %v627 = vld [vmem:[%s5] sm:$0x3f]
    %629 = vset.pattern.permute.xlu0 0
    %630 = vperm.xlu0 %629, %v627
    %v631 = vpop.permute.xlu0 %630
    %vm633 = vcmask 64512
    %v635 = vsel %vm633, %v610, 0
    %vm637 = vcmask 1043456
    %v639 = vsel %vm637, %v611, 0
    %v642 = vsel %vm637, %v612, 0
    %v645 = vsel %vm637, %v613, 0
    %v648 = vsel %vm637, %v614, 0
    %v651 = vsel %vm637, %v615, 0
    %v654 = vsel %vm637, %v616, 0
    %v657 = vsel %vm637, %v617, 0
    %v660 = vsel %vm637, %v618, 0
    %v663 = vsel %vm637, %v619, 0
    %v666 = vsel %vm637, %v620, 0
    %v669 = vsel %vm637, %v621, 0
    %v672 = vsel %vm637, %v622, 0
    %v675 = vsel %vm637, %v623, 0
    %v678 = vsel %vm637, %v624, 0
    %v681 = vsel %vm637, %v625, 0
    %v684 = vsel %vm637, %v626, 0
    %686 = vmatprep.subr.bf16.mxu0 %v642
    %687 = vmatpush1.bf16.msra.mxu0 %v639
    %688 = vmatprep.subr.bf16.mxu0 0
    %689 = vmatpush1.bf16.msra.mxu0 0
    %690 = vmatprep.subr.bf16.mxu0 0
    %691 = vmatpush1.bf16.msra.mxu0 0
    %692 = vmatprep.subr.bf16.mxu0 0
    %693 = vmatpush1.bf16.msra.mxu0 0
    %694 = vmatprep.subr.bf16.mxu0 0
    %695 = vmatpush1.bf16.msra.mxu0 0
    %696 = vmatprep.subr.bf16.mxu0 0
    %697 = vmatpush1.bf16.msra.mxu0 0
    %698 = vmatprep.subr.bf16.mxu0 0
    %699 = vmatpush1.bf16.msra.mxu0 0
    %700 = vmatprep.subr.bf16.mxu0 0
    %701 = vmatpush1.bf16.msra.mxu0 0
    %702 = vmatprep.subr.bf16.mxu0 0
    %703 = vmatpush1.bf16.msra.mxu0 0
    %704 = vmatprep.subr.bf16.mxu0 0
    %705 = vmatpush1.bf16.msra.mxu0 0
    %706 = vmatprep.subr.bf16.mxu0 0
    %707 = vmatpush1.bf16.msra.mxu0 0
    %708 = vmatprep.subr.bf16.mxu0 0
    %709 = vmatpush1.bf16.msra.mxu0 0
    %710 = vmatprep.subr.bf16.mxu0 0
    %711 = vmatpush1.bf16.msra.mxu0 0
    %712 = vmatprep.subr.bf16.mxu0 0
    %713 = vmatpush1.bf16.msra.mxu0 0
    %714 = vmatprep.subr.bf16.mxu0 0
    %715 = vmatpush1.bf16.msra.mxu0 0
    %716 = vmatprep.subr.bf16.mxu0 0
    %717 = vmatpush1.bf16.msra.mxu0 0
    %718 = vmatprep.mubr.bf16.mxu0 0
    %719 = vmatmul.mubr.bf16.gmra.mrb[0].mxu0 %v635
    %v720 = vpop.f32.mrb[0].mxu0
    %v721 = vadd.f32 %v631, %v720
    %v722 = vpop.f32.mrb[0].mxu0
    %v723 = vadd.f32 %v631, %v722
    %v724 = vpop.f32.mrb[0].mxu0
    %v725 = vpop.f32.mrb[0].mxu0
    %726 = vdwg.mxu0
    %727 = vmatprep.subr.bf16.mxu0 %v648
    %728 = vmatpush1.bf16.msra.mxu0 %v645
    %729 = vmatprep.subr.bf16.mxu0 0
    %730 = vmatpush1.bf16.msra.mxu0 0
    %731 = vmatprep.subr.bf16.mxu0 0
    %732 = vmatpush1.bf16.msra.mxu0 0
    %733 = vmatprep.subr.bf16.mxu0 0
    %734 = vmatpush1.bf16.msra.mxu0 0
    %735 = vmatprep.subr.bf16.mxu0 0
    %736 = vmatpush1.bf16.msra.mxu0 0
    %737 = vmatprep.subr.bf16.mxu0 0
    %738 = vmatpush1.bf16.msra.mxu0 0
    %739 = vmatprep.subr.bf16.mxu0 0
    %740 = vmatpush1.bf16.msra.mxu0 0
    %741 = vmatprep.subr.bf16.mxu0 0
    %742 = vmatpush1.bf16.msra.mxu0 0
    %743 = vmatprep.subr.bf16.mxu0 0
    %744 = vmatpush1.bf16.msra.mxu0 0
    %745 = vmatprep.subr.bf16.mxu0 0
    %746 = vmatpush1.bf16.msra.mxu0 0
    %747 = vmatprep.subr.bf16.mxu0 0
    %748 = vmatpush1.bf16.msra.mxu0 0
    %749 = vmatprep.subr.bf16.mxu0 0
    %750 = vmatpush1.bf16.msra.mxu0 0
    %751 = vmatprep.subr.bf16.mxu0 0
    %752 = vmatpush1.bf16.msra.mxu0 0
    %753 = vmatprep.subr.bf16.mxu0 0
    %754 = vmatpush1.bf16.msra.mxu0 0
    %755 = vmatprep.subr.bf16.mxu0 0
    %756 = vmatpush1.bf16.msra.mxu0 0
    %757 = vmatprep.subr.bf16.mxu0 0
    %758 = vmatpush1.bf16.msra.mxu0 0
    %759 = vmatprep.mubr.bf16.mxu0 0
    %760 = vmatmul.mubr.bf16.gmra.mrb[0].mxu0 %v635
    %v761 = vpop.f32.mrb[0].mxu0
    %v762 = vadd.f32 %v631, %v761
    %v763 = vpop.f32.mrb[0].mxu0
    %v764 = vadd.f32 %v631, %v763
    %v765 = vpop.f32.mrb[0].mxu0
    %v766 = vpop.f32.mrb[0].mxu0
    %767 = vdwg.mxu0
    %768 = vmatprep.subr.bf16.mxu0 %v654
    %769 = vmatpush1.bf16.msra.mxu0 %v651
    %770 = vmatprep.subr.bf16.mxu0 0
    %771 = vmatpush1.bf16.msra.mxu0 0
    %772 = vmatprep.subr.bf16.mxu0 0
    %773 = vmatpush1.bf16.msra.mxu0 0
    %774 = vmatprep.subr.bf16.mxu0 0
    %775 = vmatpush1.bf16.msra.mxu0 0
    %776 = vmatprep.subr.bf16.mxu0 0
    %777 = vmatpush1.bf16.msra.mxu0 0
    %778 = vmatprep.subr.bf16.mxu0 0
    %779 = vmatpush1.bf16.msra.mxu0 0
    %780 = vmatprep.subr.bf16.mxu0 0
    %781 = vmatpush1.bf16.msra.mxu0 0
    %782 = vmatprep.subr.bf16.mxu0 0
    %783 = vmatpush1.bf16.msra.mxu0 0
    %784 = vmatprep.subr.bf16.mxu0 0
    %785 = vmatpush1.bf16.msra.mxu0 0
    %786 = vmatprep.subr.bf16.mxu0 0
    %787 = vmatpush1.bf16.msra.mxu0 0
    %788 = vmatprep.subr.bf16.mxu0 0
    %789 = vmatpush1.bf16.msra.mxu0 0
    %790 = vmatprep.subr.bf16.mxu0 0
    %791 = vmatpush1.bf16.msra.mxu0 0
    %792 = vmatprep.subr.bf16.mxu0 0
    %793 = vmatpush1.bf16.msra.mxu0 0
    %794 = vmatprep.subr.bf16.mxu0 0
    %795 = vmatpush1.bf16.msra.mxu0 0
    %796 = vmatprep.subr.bf16.mxu0 0
    %797 = vmatpush1.bf16.msra.mxu0 0
    %798 = vmatprep.subr.bf16.mxu0 0
    %799 = vmatpush1.bf16.msra.mxu0 0
    %800 = vmatprep.mubr.bf16.mxu0 0
    %801 = vmatmul.mubr.bf16.gmra.mrb[0].mxu0 %v635
    %v802 = vpop.f32.mrb[0].mxu0
    %v803 = vadd.f32 %v631, %v802
    %v804 = vpop.f32.mrb[0].mxu0
    %v805 = vadd.f32 %v631, %v804
    %v806 = vpop.f32.mrb[0].mxu0
    %v807 = vpop.f32.mrb[0].mxu0
    %808 = vdwg.mxu0
    %809 = vmatprep.subr.bf16.mxu0 %v660
    %810 = vmatpush1.bf16.msra.mxu0 %v657
    %811 = vmatprep.subr.bf16.mxu0 0
    %812 = vmatpush1.bf16.msra.mxu0 0
    %813 = vmatprep.subr.bf16.mxu0 0
    %814 = vmatpush1.bf16.msra.mxu0 0
    %815 = vmatprep.subr.bf16.mxu0 0
    %816 = vmatpush1.bf16.msra.mxu0 0
    %817 = vmatprep.subr.bf16.mxu0 0
    %818 = vmatpush1.bf16.msra.mxu0 0
    %819 = vmatprep.subr.bf16.mxu0 0
    %820 = vmatpush1.bf16.msra.mxu0 0
    %821 = vmatprep.subr.bf16.mxu0 0
    %822 = vmatpush1.bf16.msra.mxu0 0
    %823 = vmatprep.subr.bf16.mxu0 0
    %824 = vmatpush1.bf16.msra.mxu0 0
    %825 = vmatprep.subr.bf16.mxu0 0
    %826 = vmatpush1.bf16.msra.mxu0 0
    %827 = vmatprep.subr.bf16.mxu0 0
    %828 = vmatpush1.bf16.msra.mxu0 0
    %829 = vmatprep.subr.bf16.mxu0 0
    %830 = vmatpush1.bf16.msra.mxu0 0
    %831 = vmatprep.subr.bf16.mxu0 0
    %832 = vmatpush1.bf16.msra.mxu0 0
    %833 = vmatprep.subr.bf16.mxu0 0
    %834 = vmatpush1.bf16.msra.mxu0 0
    %835 = vmatprep.subr.bf16.mxu0 0
    %836 = vmatpush1.bf16.msra.mxu0 0
    %837 = vmatprep.subr.bf16.mxu0 0
    %838 = vmatpush1.bf16.msra.mxu0 0
    %839 = vmatprep.subr.bf16.mxu0 0
    %840 = vmatpush1.bf16.msra.mxu0 0
    %841 = vmatprep.mubr.bf16.mxu0 0
    %842 = vmatmul.mubr.bf16.gmra.mrb[0].mxu0 %v635
    %v843 = vpop.f32.mrb[0].mxu0
    %v844 = vadd.f32 %v631, %v843
    %v845 = vpop.f32.mrb[0].mxu0
    %v846 = vadd.f32 %v631, %v845
    %v847 = vpop.f32.mrb[0].mxu0
    %v848 = vpop.f32.mrb[0].mxu0
    %849 = vdwg.mxu0
    %850 = vmatprep.subr.bf16.mxu0 %v666
    %851 = vmatpush1.bf16.msra.mxu0 %v663
    %852 = vmatprep.subr.bf16.mxu0 0
    %853 = vmatpush1.bf16.msra.mxu0 0
    %854 = vmatprep.subr.bf16.mxu0 0
    %855 = vmatpush1.bf16.msra.mxu0 0
    %856 = vmatprep.subr.bf16.mxu0 0
    %857 = vmatpush1.bf16.msra.mxu0 0
    %858 = vmatprep.subr.bf16.mxu0 0
    %859 = vmatpush1.bf16.msra.mxu0 0
    %860 = vmatprep.subr.bf16.mxu0 0
    %861 = vmatpush1.bf16.msra.mxu0 0
    %862 = vmatprep.subr.bf16.mxu0 0
    %863 = vmatpush1.bf16.msra.mxu0 0
    %864 = vmatprep.subr.bf16.mxu0 0
    %865 = vmatpush1.bf16.msra.mxu0 0
    %866 = vmatprep.subr.bf16.mxu0 0
    %867 = vmatpush1.bf16.msra.mxu0 0
    %868 = vmatprep.subr.bf16.mxu0 0
    %869 = vmatpush1.bf16.msra.mxu0 0
    %870 = vmatprep.subr.bf16.mxu0 0
    %871 = vmatpush1.bf16.msra.mxu0 0
    %872 = vmatprep.subr.bf16.mxu0 0
    %873 = vmatpush1.bf16.msra.mxu0 0
    %874 = vmatprep.subr.bf16.mxu0 0
    %875 = vmatpush1.bf16.msra.mxu0 0
    %876 = vmatprep.subr.bf16.mxu0 0
    %877 = vmatpush1.bf16.msra.mxu0 0
    %878 = vmatprep.subr.bf16.mxu0 0
    %879 = vmatpush1.bf16.msra.mxu0 0
    %880 = vmatprep.subr.bf16.mxu0 0
    %881 = vmatpush1.bf16.msra.mxu0 0
    %882 = vmatprep.mubr.bf16.mxu0 0
    %883 = vmatmul.mubr.bf16.gmra.mrb[0].mxu0 %v635
    %v884 = vpop.f32.mrb[0].mxu0
    %v885 = vadd.f32 %v631, %v884
    %v886 = vpop.f32.mrb[0].mxu0
    %v887 = vadd.f32 %v631, %v886
    %v888 = vpop.f32.mrb[0].mxu0
    %v889 = vpop.f32.mrb[0].mxu0
    %890 = vdwg.mxu0
    %891 = vmatprep.subr.bf16.mxu0 %v672
    %892 = vmatpush1.bf16.msra.mxu0 %v669
    %893 = vmatprep.subr.bf16.mxu0 0
    %894 = vmatpush1.bf16.msra.mxu0 0
    %895 = vmatprep.subr.bf16.mxu0 0
    %896 = vmatpush1.bf16.msra.mxu0 0
    %897 = vmatprep.subr.bf16.mxu0 0
    %898 = vmatpush1.bf16.msra.mxu0 0
    %899 = vmatprep.subr.bf16.mxu0 0
    %900 = vmatpush1.bf16.msra.mxu0 0
    %901 = vmatprep.subr.bf16.mxu0 0
    %902 = vmatpush1.bf16.msra.mxu0 0
    %903 = vmatprep.subr.bf16.mxu0 0
    %904 = vmatpush1.bf16.msra.mxu0 0
    %905 = vmatprep.subr.bf16.mxu0 0
    %906 = vmatpush1.bf16.msra.mxu0 0
    %907 = vmatprep.subr.bf16.mxu0 0
    %908 = vmatpush1.bf16.msra.mxu0 0
    %909 = vmatprep.subr.bf16.mxu0 0
    %910 = vmatpush1.bf16.msra.mxu0 0
    %911 = vmatprep.subr.bf16.mxu0 0
    %912 = vmatpush1.bf16.msra.mxu0 0
    %913 = vmatprep.subr.bf16.mxu0 0
    %914 = vmatpush1.bf16.msra.mxu0 0
    %915 = vmatprep.subr.bf16.mxu0 0
    %916 = vmatpush1.bf16.msra.mxu0 0
    %917 = vmatprep.subr.bf16.mxu0 0
    %918 = vmatpush1.bf16.msra.mxu0 0
    %919 = vmatprep.subr.bf16.mxu0 0
    %920 = vmatpush1.bf16.msra.mxu0 0
    %921 = vmatprep.subr.bf16.mxu0 0
    %922 = vmatpush1.bf16.msra.mxu0 0
    %923 = vmatprep.mubr.bf16.mxu0 0
    %924 = vmatmul.mubr.bf16.gmra.mrb[0].mxu0 %v635
    %v925 = vpop.f32.mrb[0].mxu0
    %v926 = vadd.f32 %v631, %v925
    %v927 = vpop.f32.mrb[0].mxu0
    %v928 = vadd.f32 %v631, %v927
    %v929 = vpop.f32.mrb[0].mxu0
    %v930 = vpop.f32.mrb[0].mxu0
    %931 = vdwg.mxu0
    %932 = vmatprep.subr.bf16.mxu0 %v678
    %933 = vmatpush1.bf16.msra.mxu0 %v675
    %934 = vmatprep.subr.bf16.mxu0 0
    %935 = vmatpush1.bf16.msra.mxu0 0
    %936 = vmatprep.subr.bf16.mxu0 0
    %937 = vmatpush1.bf16.msra.mxu0 0
    %938 = vmatprep.subr.bf16.mxu0 0
    %939 = vmatpush1.bf16.msra.mxu0 0
    %940 = vmatprep.subr.bf16.mxu0 0
    %941 = vmatpush1.bf16.msra.mxu0 0
    %942 = vmatprep.subr.bf16.mxu0 0
    %943 = vmatpush1.bf16.msra.mxu0 0
    %944 = vmatprep.subr.bf16.mxu0 0
    %945 = vmatpush1.bf16.msra.mxu0 0
    %946 = vmatprep.subr.bf16.mxu0 0
    %947 = vmatpush1.bf16.msra.mxu0 0
    %948 = vmatprep.subr.bf16.mxu0 0
    %949 = vmatpush1.bf16.msra.mxu0 0
    %950 = vmatprep.subr.bf16.mxu0 0
    %951 = vmatpush1.bf16.msra.mxu0 0
    %952 = vmatprep.subr.bf16.mxu0 0
    %953 = vmatpush1.bf16.msra.mxu0 0
    %954 = vmatprep.subr.bf16.mxu0 0
    %955 = vmatpush1.bf16.msra.mxu0 0
    %956 = vmatprep.subr.bf16.mxu0 0
    %957 = vmatpush1.bf16.msra.mxu0 0
    %958 = vmatprep.subr.bf16.mxu0 0
    %959 = vmatpush1.bf16.msra.mxu0 0
    %960 = vmatprep.subr.bf16.mxu0 0
    %961 = vmatpush1.bf16.msra.mxu0 0
    %962 = vmatprep.subr.bf16.mxu0 0
    %963 = vmatpush1.bf16.msra.mxu0 0
    %964 = vmatprep.mubr.bf16.mxu0 0
    %965 = vmatmul.mubr.bf16.gmra.mrb[0].mxu0 %v635
    %v966 = vpop.f32.mrb[0].mxu0
    %v967 = vadd.f32 %v631, %v966
    %v968 = vpop.f32.mrb[0].mxu0
    %v969 = vadd.f32 %v631, %v968
    %v970 = vpop.f32.mrb[0].mxu0
    %v971 = vpop.f32.mrb[0].mxu0
    %972 = vdwg.mxu0
    %973 = vmatprep.subr.bf16.mxu0 %v684
    %974 = vmatpush1.bf16.msra.mxu0 %v681
    %975 = vmatprep.subr.bf16.mxu0 0
    %976 = vmatpush1.bf16.msra.mxu0 0
    %977 = vmatprep.subr.bf16.mxu0 0
    %978 = vmatpush1.bf16.msra.mxu0 0
    %979 = vmatprep.subr.bf16.mxu0 0
    %980 = vmatpush1.bf16.msra.mxu0 0
    %981 = vmatprep.subr.bf16.mxu0 0
    %982 = vmatpush1.bf16.msra.mxu0 0
    %983 = vmatprep.subr.bf16.mxu0 0
    %984 = vmatpush1.bf16.msra.mxu0 0
    %985 = vmatprep.subr.bf16.mxu0 0
    %986 = vmatpush1.bf16.msra.mxu0 0
    %987 = vmatprep.subr.bf16.mxu0 0
    %988 = vmatpush1.bf16.msra.mxu0 0
    %989 = vmatprep.subr.bf16.mxu0 0
    %990 = vmatpush1.bf16.msra.mxu0 0
    %991 = vmatprep.subr.bf16.mxu0 0
    %992 = vmatpush1.bf16.msra.mxu0 0
    %993 = vmatprep.subr.bf16.mxu0 0
    %994 = vmatpush1.bf16.msra.mxu0 0
    %995 = vmatprep.subr.bf16.mxu0 0
    %996 = vmatpush1.bf16.msra.mxu0 0
    %997 = vmatprep.subr.bf16.mxu0 0
    %998 = vmatpush1.bf16.msra.mxu0 0
    %999 = vmatprep.subr.bf16.mxu0 0
    %1000 = vmatpush1.bf16.msra.mxu0 0
    %1001 = vmatprep.subr.bf16.mxu0 0
    %1002 = vmatpush1.bf16.msra.mxu0 0
    %1003 = vmatprep.subr.bf16.mxu0 0
    %1004 = vmatpush1.bf16.msra.mxu0 0
    %1005 = vmatprep.mubr.bf16.mxu0 0
    %1006 = vmatmul.mubr.bf16.gmra.mrb[0].mxu0 %v635
    %v1007 = vpop.f32.mrb[0].mxu0
    %v1008 = vadd.f32 %v631, %v1007
    %v1009 = vpop.f32.mrb[0].mxu0
    %v1010 = vadd.f32 %v631, %v1009
    %v1011 = vpop.f32.mrb[0].mxu0
    %v1012 = vpop.f32.mrb[0].mxu0
    %1013 = vdwg.mxu0
    %1014 = vst [vmem:[%s6] sm:$0x3f] %v721
    %1015 = vst [vmem:[%s6 + $0x8] sm:$0x3f] %v723
    %1016 = vst [vmem:[%s6 + $0x10] sm:$0x3f] %v762
    %1017 = vst [vmem:[%s6 + $0x18] sm:$0x3f] %v764
    %1018 = vst [vmem:[%s6 + $0x20] sm:$0x3f] %v803
    %1019 = vst [vmem:[%s6 + $0x28] sm:$0x3f] %v805
    %1020 = vst [vmem:[%s6 + $0x30] sm:$0x3f] %v844
    %1021 = vst [vmem:[%s6 + $0x38] sm:$0x3f] %v846
    %1022 = vst [vmem:[%s6 + $0x40] sm:$0x3f] %v885
    %1023 = vst [vmem:[%s6 + $0x48] sm:$0x3f] %v887
    %1024 = vst [vmem:[%s6 + $0x50] sm:$0x3f] %v926
    %1025 = vst [vmem:[%s6 + $0x58] sm:$0x3f] %v928
    %1026 = vst [vmem:[%s6 + $0x60] sm:$0x3f] %v967
    %1027 = vst [vmem:[%s6 + $0x68] sm:$0x3f] %v969
    %1028 = vst [vmem:[%s6 + $0x70] sm:$0x3f] %v1008
    %1029 = vst [vmem:[%s6 + $0x78] sm:$0x3f] %v1010
  $region33: #{part_seg_head_forward.1} parent=0 // pred_fallthru
    _
  // Predicated region
  $region34: #{part_seg_head_forward.1} parent=0 // pred_check
    _
  $region35: #{part_seg_head_forward.1} parent=0 // pred_check_branch
    %1031 = sbr.rel (0) target = $region37
  $region36: #{part_seg_head_forward.1} parent=0 // pred_region
    _
  $region37: #{part_seg_head_forward.1} parent=0 // pred_fallthru
    _
  // Predicated region
  $region38: #{part_seg_head_forward.1} parent=0 // pred_check
    _
  $region39: #{part_seg_head_forward.1} parent=0 // pred_check_branch
    %1033 = sbr.rel (0) target = $region41
  $region40: #{part_seg_head_forward.1} parent=0 // pred_region
    _
  $region41: #{part_seg_head_forward.1} parent=0 // pred_fallthru
    _

</llo_original>
